<compile_context>
chip_gen: v6e
topology: v6e:2x2x1
jax: 0.10.0
libtpu: 0.0.40
codegen_flags: <defaults>
</compile_context>

<pallas_src>
import functools
import math

import jax
import jax.numpy as jnp
from jax.experimental import pallas as pl
from jax.experimental.pallas import tpu as pltpu


def _round_up(a, b):
    return ((a + b - 1) // b) * b


def _row_mult(dtype):
    # Sublane tile multiple for a packed dtype: 8 for 32-bit, 16 for 16-bit, 32 for 8-bit.
    return 8 * max(1, 4 // jnp.dtype(dtype).itemsize)


def _device_kind():
    try:
        return jax.devices()[0].device_kind.lower()
    except Exception:  # pragma: no cover - CPU / interpret fallbacks
        return ""


def _default_n_outer():
    # Two TensorCores per chip only on v7x; on v5e/v6e a 2-way split is pure overhead.
    return 2 if "v7" in _device_kind() else 1


def _default_tile_rows():
    # Bigger tiles amortize the ~0.35us per-grid-step overhead on v7x's 3.2 TB/s HBM.
    return 4096 if "v7" in _device_kind() else 2048


def _focal_kernel(x_ref, lbl_ref, out_ref, acc_ref, *, alpha, gamma,
                  n_inner, tile_eff, chunk_rows, n_chunks,
                  full_rows, rem, needs_mask):
    i = pl.program_id(1)  # inner (reduction) axis

    @pl.when(i == 0)
    def _():
        acc_ref[...] = jnp.zeros_like(acc_ref)

    # Logical first row this grid step covers (program-id based, NOT the clamped
    # data block index) -- used only for the validity mask.
    block_row0 = (pl.program_id(0) * n_inner + i) * tile_eff

    def chunk_body(c):
        off = c * chunk_rows
        if not isinstance(off, int):
            off = pl.multiple_of(off, chunk_rows)

        x = x_ref[pl.ds(off, chunk_rows), :].astype(jnp.float32)
        lbl = lbl_ref[pl.ds(off, chunk_rows), :]
        is_pos = lbl == 1

        # Fold the pos/neg branch into a single sign-flipped logit:
        #   z        = x  (pos)  /  -x (neg)
        #   p_sel    = sigmoid(-z)   == 1-p (pos) / p (neg)       -> pow base
        #   logp_sel = log_sigmoid(z) == log p (pos) / log(1-p) (neg)
        # computed from one exp + one log1p per element.
        z = jnp.where(is_pos, x, -x)
        zn = z >= 0
        e = jnp.exp(-jnp.abs(x))                       # exp(-|x|) == exp(-|z|)
        inv = pl.reciprocal(1.0 + e, approx=False)     # EUP, frees VALU slots
        sp = jnp.log1p(e)                              # softplus(-|z|)

        p_sel = jnp.where(zn, e * inv, inv)            # sigmoid(-z)
        logp_sel = jnp.where(zn, -sp, z - sp)          # log sigmoid(z)
        coeff = jnp.where(is_pos, jnp.float32(alpha), jnp.float32(1.0 - alpha))

        g = float(gamma)
        if g.is_integer() and 0 <= g <= 8:
            n = int(g)
            if n == 0:
                pow_sel = jnp.ones_like(p_sel)
            else:
                pow_sel = p_sel
                for _ in range(n - 1):                 # gamma=2 -> one VPU mul
                    pow_sel = pow_sel * p_sel
        else:
            pow_sel = p_sel ** jnp.float32(g)

        loss = -coeff * pow_sel * logp_sel

        if needs_mask:
            # Mask ragged tail (rows past the array / lanes past `total`).
            row_ids = block_row0 + c * chunk_rows + jax.lax.broadcasted_iota(
                jnp.int32, (chunk_rows, 128), 0)
            if rem == 0:
                valid = row_ids < full_rows
            else:
                lane_ids = jax.lax.broadcasted_iota(jnp.int32, (chunk_rows, 128), 1)
                valid = (row_ids < full_rows) | ((row_ids == full_rows) & (lane_ids < rem))
            loss = jnp.where(valid, loss, jnp.float32(0.0))

        # Pure-VPU fold of (chunk_rows,128) into the resident (8,128) accumulator.
        acc_ref[...] += loss.reshape(chunk_rows // 8, 8, 128).sum(axis=0)

    if n_chunks == 1:
        chunk_body(0)
    else:
        pl.loop(0, n_chunks)(chunk_body)

    @pl.when(i == pl.num_programs(1) - 1)
    def _():
        out_ref[...] = acc_ref[...]


def focal_loss_v2(logits, label, alpha=0.25, gamma=2.0, reduction="mean",
                  *, tile_rows=None, n_outer=None):
    """FocalLossV2(alpha, gamma) forward pass on TPU via Pallas.

    logits: float array, any shape (e.g. NCHW).
    label:  integer/bool array of the same shape with values in {0, 1}.
    reduction: 'mean' (default) or 'sum'.
    Returns a scalar float32 loss.
    """
    assert logits.shape == label.shape
    assert reduction in ("mean", "sum")
    total = int(logits.size)

    if n_outer is None:
        n_outer = _default_n_outer()
    if tile_rows is None:
        tile_rows = _default_tile_rows()

    # Native dtypes straight into the kernel (no wrapper cast passes).  Only bools
    # are normalized, since packed-bit refs are awkward.
    if label.dtype == jnp.bool_:
        label = label.astype(jnp.int8)

    x_flat = logits.reshape(-1)
    l_flat = label.reshape(-1)

    full_rows, rem = divmod(total, 128)
    rows_arr = full_rows + (1 if rem else 0)
    if rem:
        # Rare path: pad only to the next multiple of 128 (sub-128-element tail);
        # the padded elements are masked in-kernel via the iota mask.
        pad = rows_arr * 128 - total
        x_flat = jnp.pad(x_flat, (0, pad))
        l_flat = jnp.pad(l_flat, (0, pad))
    x2d = x_flat.reshape(rows_arr, 128)   # free reshape when rem == 0
    l2d = l_flat.reshape(rows_arr, 128)

    row_align = math.lcm(_row_mult(x2d.dtype), _row_mult(l2d.dtype))
    chunk_target = 256                    # ~32 live f32 vregs per chunk

    tile_eff = min(int(tile_rows), _round_up(rows_arr, row_align))
    tile_eff = _round_up(tile_eff, row_align)
    if tile_eff >= chunk_target:
        tile_eff = _round_up(tile_eff, chunk_target)
        chunk_rows = chunk_target
    else:
        chunk_rows = tile_eff
    n_chunks = tile_eff // chunk_rows

    blocks_total = pl.cdiv(rows_arr, tile_eff)
    n_outer_eff = max(1, min(int(n_outer), blocks_total))
    n_inner = pl.cdiv(blocks_total, n_outer_eff)

    covered_rows = n_outer_eff * n_inner * tile_eff
    needs_mask = (rem != 0) or (covered_rows != full_rows)

    # Clamp the data block index so an over-covering grid step never DMAs a fully
    # out-of-bounds block; its (masked) contribution is zero.
    def block_idx(o, i):
        return (jnp.minimum(o * n_inner + i, blocks_total - 1), 0)

    kernel = functools.partial(
        _focal_kernel,
        alpha=float(alpha), gamma=float(gamma),
        n_inner=n_inner, tile_eff=tile_eff,
        chunk_rows=chunk_rows, n_chunks=n_chunks,
        full_rows=full_rows, rem=rem, needs_mask=needs_mask)

    partials = pl.pallas_call(
        kernel,
        out_shape=jax.ShapeDtypeStruct((n_outer_eff * 8, 128), jnp.float32),
        grid_spec=pltpu.PrefetchScalarGridSpec(
            num_scalar_prefetch=0,
            grid=(n_outer_eff, n_inner),
            in_specs=[
                pl.BlockSpec((tile_eff, 128), block_idx),
                pl.BlockSpec((tile_eff, 128), block_idx),
            ],
            out_specs=pl.BlockSpec((8, 128), lambda o, i: (o, 0)),
            scratch_shapes=[pltpu.VMEM((8, 128), jnp.float32)],
        ),
        compiler_params=pltpu.CompilerParams(
            dimension_semantics=("parallel", "arbitrary"),
            vmem_limit_bytes=32 * 1024 * 1024,
        ),
    )(x2d, l2d)

    total_sum = jnp.sum(partials)
    if reduction == "mean":
        return total_sum / jnp.float32(total)
    return total_sum
    # TODO(synk): backward pass (FocalSigmoidLossFuncV2.backward) not implemented.


def _focal_loss_ref(logits, label, alpha=0.25, gamma=2.0):
    x = logits.astype(jnp.float32)
    is_pos = label == 1
    coeff = jnp.where(is_pos, alpha, 1.0 - alpha)
    probs = jax.nn.sigmoid(x)
    sp = jnp.log1p(jnp.exp(-jnp.abs(x)))
    log_probs = jnp.where(x >= 0, -sp, x - sp)
    log_1_probs = jnp.where(x >= 0, -x - sp, -sp)
    term1 = (1.0 - probs) ** gamma * log_probs
    term2 = probs ** gamma * log_1_probs
    loss = -coeff * jnp.where(is_pos, term1, term2)
    return jnp.mean(loss)


if __name__ == "__main__":
    key = jax.random.PRNGKey(0)
    k1, k2, k3, k4 = jax.random.split(key, 4)

    # NCHW, small shapes: batch=2, channels=4, spatial=16x16 (total % 128 == 0:
    # pad-free, cast-free fast path).
    logits = jax.random.normal(k1, (2, 4, 16, 16), dtype=jnp.float32) * 3.0
    label = jax.random.bernoulli(k2, p=0.3, shape=(2, 4, 16, 16)).astype(jnp.int32)

    loss = jax.block_until_ready(focal_loss_v2(logits, label, alpha=0.25, gamma=2.0))
    ref = jax.block_until_ready(_focal_loss_ref(logits, label, 0.25, 2.0))
    assert jnp.allclose(loss, ref, rtol=1e-4, atol=1e-6), (loss, ref)

    # Ragged case (total not a multiple of 128) exercises the in-kernel iota mask.
    logits2 = jax.random.normal(k3, (3, 5, 7, 11), dtype=jnp.float32) * 2.0
    label2 = jax.random.bernoulli(k4, p=0.4, shape=(3, 5, 7, 11)).astype(jnp.int32)
    loss2 = jax.block_until_ready(focal_loss_v2(logits2, label2, alpha=0.25, gamma=2.0))
    ref2 = jax.block_until_ready(_focal_loss_ref(logits2, label2, 0.25, 2.0))
    assert jnp.allclose(loss2, ref2, rtol=1e-4, atol=1e-6), (loss2, ref2)

    print("KERNEL_OK")
</pallas_src>

<mosaic_0001>
module attributes {stable_mosaic.version = 11 : i64} {
  func.func @_focal_kernel(%arg0: i32, %arg1: i32, %arg2: memref<16x128xf32, #tpu.memory_space<vmem>>, %arg3: memref<16x128xi32, #tpu.memory_space<vmem>>, %arg4: memref<8x128xf32, #tpu.memory_space<vmem>>, %arg5: memref<8x128xf32, #tpu.memory_space<vmem>>) attributes {dimension_semantics = [#tpu.dimension_semantics<parallel>, #tpu.dimension_semantics<arbitrary>], iteration_bounds = array<i64: 1, 1>, scalar_prefetch = 0 : i64, scratch_operands = 1 : i64, tpu.core_type = #tpu.core_type<tc>, window_params = [{transform_indices = @transform_0, window_bounds = array<i64: 16, 128>}, {transform_indices = @transform_1, window_bounds = array<i64: 16, 128>}, {transform_indices = @transform_2, window_bounds = array<i64: 8, 128>}]} {
    %c0_i32 = arith.constant 0 : i32
    %0 = arith.cmpi eq, %arg1, %c0_i32 : i32
    %1 = arith.extui %0 : i1 to i32
    %c0_i32_0 = arith.constant 0 : i32
    %2 = arith.cmpi ne, %1, %c0_i32_0 : i32
    scf.if %2 {
      %cst_18 = arith.constant 0.000000e+00 : f32
      %42 = vector.broadcast %cst_18 : f32 to vector<8x128xf32>
      %c0_19 = arith.constant 0 : index
      %c0_20 = arith.constant 0 : index
      %43 = vector.load %arg5[%c0_19, %c0_20] : memref<8x128xf32, #tpu.memory_space<vmem>>, vector<8x128xf32>
      tpu.vector_store %arg5[%c0_19, %c0_20], %42 {strides = array<i32>} : memref<8x128xf32, #tpu.memory_space<vmem>>, vector<8x128xf32>,
    } else {
    }
    %c0 = arith.constant 0 : index
    %c0_1 = arith.constant 0 : index
    %3 = vector.load %arg2[%c0, %c0_1] : memref<16x128xf32, #tpu.memory_space<vmem>>, vector<16x128xf32>
    %c0_2 = arith.constant 0 : index
    %c0_3 = arith.constant 0 : index
    %4 = vector.load %arg3[%c0_2, %c0_3] : memref<16x128xi32, #tpu.memory_space<vmem>>, vector<16x128xi32>
    %c1_i32 = arith.constant 1 : i32
    %5 = vector.broadcast %c1_i32 : i32 to vector<16x128xi32>
    %6 = arith.cmpi eq, %4, %5 : vector<16x128xi32>
    %cst = arith.constant 0.000000e+00 : f32
    %7 = vector.broadcast %cst : f32 to vector<16x128xf32>
    %8 = arith.subf %7, %3 : vector<16x128xf32>
    %9 = arith.select %6, %3, %8 : vector<16x128xi1>, vector<16x128xf32>
    %cst_4 = arith.constant 0.000000e+00 : f32
    %10 = vector.broadcast %cst_4 : f32 to vector<16x128xf32>
    %11 = arith.cmpf oge, %9, %10 : vector<16x128xf32>
    %12 = math.absf %3 : vector<16x128xf32>
    %cst_5 = arith.constant 0.000000e+00 : f32
    %13 = vector.broadcast %cst_5 : f32 to vector<16x128xf32>
    %14 = arith.subf %13, %12 : vector<16x128xf32>
    %15 = math.exp %14 : vector<16x128xf32>
    %cst_6 = arith.constant 1.000000e+00 : f32
    %16 = vector.broadcast %cst_6 : f32 to vector<16x128xf32>
    %17 = arith.addf %16, %15 : vector<16x128xf32>
    %18 = tpu.reciprocal %17 : vector<16x128xf32> -> vector<16x128xf32>
    %19 = math.log1p %15 : vector<16x128xf32>
    %20 = arith.mulf %15, %18 : vector<16x128xf32>
    %21 = arith.select %11, %20, %18 : vector<16x128xi1>, vector<16x128xf32>
    %cst_7 = arith.constant 0.000000e+00 : f32
    %22 = vector.broadcast %cst_7 : f32 to vector<16x128xf32>
    %23 = arith.subf %22, %19 : vector<16x128xf32>
    %24 = arith.subf %9, %19 : vector<16x128xf32>
    %25 = arith.select %11, %23, %24 : vector<16x128xi1>, vector<16x128xf32>
    %cst_8 = arith.constant 2.500000e-01 : f32
    %cst_9 = arith.constant 7.500000e-01 : f32
    %26 = vector.broadcast %cst_8 : f32 to vector<16x128xf32>
    %27 = vector.broadcast %cst_9 : f32 to vector<16x128xf32>
    %28 = arith.select %6, %26, %27 : vector<16x128xi1>, vector<16x128xf32>
    %29 = arith.mulf %21, %21 : vector<16x128xf32>
    %cst_10 = arith.constant 0.000000e+00 : f32
    %30 = vector.broadcast %cst_10 : f32 to vector<16x128xf32>
    %31 = arith.subf %30, %28 : vector<16x128xf32>
    %32 = arith.mulf %31, %29 : vector<16x128xf32>
    %33 = arith.mulf %32, %25 : vector<16x128xf32>
    %c0_11 = arith.constant 0 : index
    %c0_12 = arith.constant 0 : index
    %34 = vector.load %arg5[%c0_11, %c0_12] : memref<8x128xf32, #tpu.memory_space<vmem>>, vector<8x128xf32>
    %35 = vector.shape_cast %33 : vector<16x128xf32> to vector<2x8x128xf32>
    %cst_13 = arith.constant dense<0.000000e+00> : vector<8x128xf32>
    %36 = vector.multi_reduction <add>, %35, %cst_13 [0] : vector<2x8x128xf32> to vector<8x128xf32>
    %37 = arith.addf %34, %36 : vector<8x128xf32>
    %c0_14 = arith.constant 0 : index
    %c0_15 = arith.constant 0 : index
    %38 = vector.load %arg5[%c0_14, %c0_15] : memref<8x128xf32, #tpu.memory_space<vmem>>, vector<8x128xf32>
    tpu.vector_store %arg5[%c0_14, %c0_15], %37 {strides = array<i32>} : memref<8x128xf32, #tpu.memory_space<vmem>>, vector<8x128xf32>,
    %c0_i32_16 = arith.constant 0 : i32
    %39 = arith.cmpi eq, %arg1, %c0_i32_16 : i32
    %40 = arith.extui %39 : i1 to i32
    %c0_i32_17 = arith.constant 0 : i32
    %41 = arith.cmpi ne, %40, %c0_i32_17 : i32
    scf.if %41 {
      %c0_18 = arith.constant 0 : index
      %c0_19 = arith.constant 0 : index
      %42 = vector.load %arg5[%c0_18, %c0_19] : memref<8x128xf32, #tpu.memory_space<vmem>>, vector<8x128xf32>
      %c0_20 = arith.constant 0 : index
      %c0_21 = arith.constant 0 : index
      %43 = vector.load %arg4[%c0_20, %c0_21] : memref<8x128xf32, #tpu.memory_space<vmem>>, vector<8x128xf32>
      tpu.vector_store %arg4[%c0_20, %c0_21], %42 {strides = array<i32>} : memref<8x128xf32, #tpu.memory_space<vmem>>, vector<8x128xf32>,
    } else {
    }
    return
  }
  func.func @transform_0(%arg0: i32, %arg1: i32) -> (i32, i32) {
    %c1_i32 = arith.constant 1 : i32
    %0 = arith.muli %arg0, %c1_i32 : i32
    %1 = arith.addi %0, %arg1 : i32
    %c0_i32 = arith.constant 0 : i32
    %2 = arith.minsi %1, %c0_i32 : i32
    %c0_i32_0 = arith.constant 0 : i32
    %c0_i32_1 = arith.constant 0 : i32
    return %2, %c0_i32_0 : i32, i32
  }
  func.func @transform_1(%arg0: i32, %arg1: i32) -> (i32, i32) {
    %c1_i32 = arith.constant 1 : i32
    %0 = arith.muli %arg0, %c1_i32 : i32
    %1 = arith.addi %0, %arg1 : i32
    %c0_i32 = arith.constant 0 : i32
    %2 = arith.minsi %1, %c0_i32 : i32
    %c0_i32_0 = arith.constant 0 : i32
    %c0_i32_1 = arith.constant 0 : i32
    return %2, %c0_i32_0 : i32, i32
  }
  func.func @transform_2(%arg0: i32, %arg1: i32) -> (i32, i32) {
    %c0_i32 = arith.constant 0 : i32
    %c0_i32_0 = arith.constant 0 : i32
    return %arg0, %c0_i32 : i32, i32
  }
}

</mosaic_0001>

<llo_original>
// kernel: tpu_custom_call.1
$region0: #{tpu_custom_call.1}
  #allocation0 [shape = 'u32[]', space=smem, size = 0x4, offset = 0x4, fixed_abs, tag = 'smem constant byte address 0x4 - core index']
  #allocation1 [shape = 'u32[144,128]{1,0:T(1,128)}', space=vmem, size = 0x12000, scoped, tag = 'internal scratch']
  #allocation2 [shape = 'f32[8,128]{1,0:T(8,128)}', space=vmem, size = 0x1000, scoped, tag = 'scratch operand']
  %s0 = inlined_call_operand.hbm [shape: f32[16,128], index: 0, kind: input, shape index: {}]
  %s1 = inlined_call_operand.hbm [shape: s32[16,128], index: 1, kind: input, shape index: {}]
  %s2 = inlined_call_operand.hbm [shape: f32[8,128], index: 2, kind: output, shape index: {}]
  %s3 = sld [smem:[#allocation0]]
  $region34: #{tpu_custom_call.1} parent=0
    _
  %s5 = ssub.s32 1, %s3
  %s6 = scalar_select 0, %s5, %s3
  $region1: #{tpu_custom_call.1} parent=0
    #allocation3 [shape = 'u8[8192]{0}', space=vmem, size = 0x2000, scoped, tag = 'input window, operand 0, single buffered']
    #allocation4 [shape = 's32[1]{0}', space=sflag, size = 0x4, scoped, tag = 'scoped memory for tpu_custom_call.1']
    #allocation5 [shape = 's32[1]{0}', space=sflag, size = 0x4, scoped, tag = 'scoped memory for tpu_custom_call.1']
    #allocation6 [shape = 'u8[8192]{0}', space=vmem, size = 0x2000, scoped, tag = 'input window, operand 1, single buffered']
    #allocation7 [shape = 's32[1]{0}', space=sflag, size = 0x4, scoped, tag = 'scoped memory for tpu_custom_call.1']
    #allocation8 [shape = 'u8[4096]{0}', space=vmem, size = 0x1000, scoped, tag = 'output window, operand 0, single buffered']
    %7 = vsyncpa [#allocation4], 0
    %8 = vsyncpa [#allocation7], 0
    %9 = vsyncpa [#allocation5], 0
    // Predicated region
    $region2: #{tpu_custom_call.1} parent=1 // pred_check
      _
    $region3: #{tpu_custom_call.1} parent=1 // pred_check_branch
      %11 = sbr.rel (0) target = $region5
    $region4: #{tpu_custom_call.1} parent=1 // pred_region
      %s12 = sadd.s32 0, 0
      %p13 = scmp.lt.s32.totalorder %s12, 0
      %s14 = scalar_select %p13, %s12, 0
      %s15 = smul.u32 2, %s14
      %s17 = ssub.s32 256, 256
      %18 = vsyncadd [#allocation4], %s17
      %s19 = smul.addr %s15, 128
      %s20 = scalar_lea.hbm %s0, %s19
      %s21 = sshll.u32 [#allocation3], 4
      %s22 = int_to_ptr.vmem [resolvable:$true] %s21
      %27 = dma.hbm_to_vmem [thread:$0]  %s20, 256, %s22, [#allocation4], 128, 128, 8
    $region5: #{tpu_custom_call.1} parent=1 // pred_fallthru
      _
    // Predicated region
    $region6: #{tpu_custom_call.1} parent=1 // pred_check
      _
    $region7: #{tpu_custom_call.1} parent=1 // pred_check_branch
      %29 = sbr.rel (0) target = $region9
    $region8: #{tpu_custom_call.1} parent=1 // pred_region
      %s30 = sadd.s32 0, 0
      %p31 = scmp.lt.s32.totalorder %s30, 0
      %s32 = scalar_select %p31, %s30, 0
      %s33 = smul.u32 2, %s32
      %s35 = ssub.s32 256, 256
      %36 = vsyncadd [#allocation7], %s35
      %s37 = smul.addr %s33, 128
      %s38 = scalar_lea.hbm %s1, %s37
      %s39 = sshll.u32 [#allocation6], 4
      %s40 = int_to_ptr.vmem [resolvable:$true] %s39
      %45 = dma.hbm_to_vmem [thread:$0]  %s38, 256, %s40, [#allocation7], 128, 128, 8
    $region9: #{tpu_custom_call.1} parent=1 // pred_fallthru
      _
    // Predicated region
    $region10: #{tpu_custom_call.1} parent=1 // pred_check
      _
    $region11: #{tpu_custom_call.1} parent=1 // pred_check_branch
      %47 = sbr.rel (0) target = $region13
    $region12: #{tpu_custom_call.1} parent=1 // pred_region
      %48 = dma.done [#allocation4], 256
    $region13: #{tpu_custom_call.1} parent=1 // pred_fallthru
      _
    // Predicated region
    $region14: #{tpu_custom_call.1} parent=1 // pred_check
      _
    $region15: #{tpu_custom_call.1} parent=1 // pred_check_branch
      %50 = sbr.rel (0) target = $region17
    $region16: #{tpu_custom_call.1} parent=1 // pred_region
      %51 = dma.done [#allocation7], 256
    $region17: #{tpu_custom_call.1} parent=1 // pred_fallthru
      _
    %s52 = sadd.s32 0, 0
    %p53 = scmp.lt.s32.totalorder %s52, 0
    %s54 = scalar_select %p53, %s52, 0
    %s55 = smul.u32 2, %s54
    %s56 = sadd.s32 0, 0
    %p57 = scmp.lt.s32.totalorder %s56, 0
    %s58 = scalar_select %p57, %s56, 0
    %s59 = smul.u32 2, %s58
    %p60 = scmp.eq.s32.totalorder 0, 0
    // Predicated region
    $region18: #{tpu_custom_call.1} parent=1 // pred_check
      %p61 = pneg %p60
    $region19: #{tpu_custom_call.1} parent=1 // pred_check_branch
      %63 = sbr.rel (%p61) target = $region21
    $region20: #{tpu_custom_call.1} parent=1 // pred_region
      %64 = vst [vmem:[#allocation2] sm:$0xff] 0.0
    $region21: #{tpu_custom_call.1} parent=1 // pred_fallthru
      _
    %v65 = vld [vmem:[#allocation3] sm:$0xff]
    %v66 = vld [vmem:[#allocation3 + $0x8] sm:$0xff]
    %v67 = vld [vmem:[#allocation6] sm:$0xff]
    %v68 = vld [vmem:[#allocation6 + $0x8] sm:$0xff]
    %vm69 = vcmp.eq.s32.totalorder %v67, 1
    %vm70 = vcmp.eq.s32.totalorder %v68, 1
    %v71 = vsub.f32 0.0, %v65
    %v72 = vsub.f32 0.0, %v66
    %v73 = vsel %vm69, %v65, %v71
    %v74 = vsel %vm70, %v66, %v72
    %vm75 = vcmp.ge.f32.partialorder %v73, 0.0
    %vm76 = vcmp.ge.f32.partialorder %v74, 0.0
    %v77 = vand.u32 2147483647, %v65
    %v78 = vand.u32 2147483647, %v66
    %v79 = vsub.f32 0.0, %v77
    %v80 = vsub.f32 0.0, %v78
    %v81 = vmul.f32 %v79, 1.442695
    %v82 = vpow.pop %v81
    %v83 = vmul.f32 %v80, 1.442695
    %v84 = vpow.pop %v83
    %v85 = vadd.f32 %v82, 1.0
    %v86 = vadd.f32 %v84, 1.0
    %v87 = vrcp.pop %v85
    %v88 = vrcp.pop %v86
    %v89 = vadd.f32 %v82, 1.0
    %v90 = vlog2.pop %v89
    %v91 = vmul.f32 %v90, 0.6931472
    %v92 = vmul.f32 -0.5, %v82
    %v93 = vadd.f32 %v92, 1.0
    %v94 = vmul.f32 %v93, %v82
    %v95 = vand.u32 2147483647, %v82
    %vm96 = vcmp.lt.f32.partialorder %v95, 0.0004427343
    %v97 = vsel %vm96, %v94, %v91
    %v98 = vadd.f32 %v84, 1.0
    %v99 = vlog2.pop %v98
    %v100 = vmul.f32 %v99, 0.6931472
    %v101 = vmul.f32 -0.5, %v84
    %v102 = vadd.f32 %v101, 1.0
    %v103 = vmul.f32 %v102, %v84
    %v104 = vand.u32 2147483647, %v84
    %vm105 = vcmp.lt.f32.partialorder %v104, 0.0004427343
    %v106 = vsel %vm105, %v103, %v100
    %v107 = vmul.f32 %v82, %v87
    %v108 = vmul.f32 %v84, %v88
    %v109 = vsel %vm75, %v107, %v87
    %v110 = vsel %vm76, %v108, %v88
    %v111 = vsub.f32 0.0, %v97
    %v112 = vsub.f32 0.0, %v106
    %v113 = vsub.f32 %v73, %v97
    %v114 = vsub.f32 %v74, %v106
    %v115 = vsel %vm75, %v111, %v113
    %v116 = vsel %vm76, %v112, %v114
    %v117 = vsel %vm69, 0.25, 0.75
    %v118 = vsel %vm70, 0.25, 0.75
    %v119 = vmul.f32 %v109, %v109
    %v120 = vmul.f32 %v110, %v110
    %v121 = vsub.f32 0.0, %v117
    %v122 = vsub.f32 0.0, %v118
    %v123 = vmul.f32 %v121, %v119
    %v124 = vmul.f32 %v122, %v120
    %v125 = vmul.f32 %v123, %v115
    %v126 = vmul.f32 %v124, %v116
    %v127 = vld [vmem:[#allocation2] sm:$0xff]
    %v128 = vadd.f32 %v125, %v126
    %v129 = vadd.f32 %v127, %v128
    %130 = vst [vmem:[#allocation2] sm:$0xff] %v129
    // Predicated region
    $region22: #{tpu_custom_call.1} parent=1 // pred_check
      %p131 = pneg %p60
    $region23: #{tpu_custom_call.1} parent=1 // pred_check_branch
      %133 = sbr.rel (%p131) target = $region25
    $region24: #{tpu_custom_call.1} parent=1 // pred_region
      %v134 = vld [vmem:[#allocation2] sm:$0xff]
      %135 = vst [vmem:[#allocation8] sm:$0xff] %v134
    $region25: #{tpu_custom_call.1} parent=1 // pred_fallthru
      _
    // Predicated region
    $region26: #{tpu_custom_call.1} parent=1 // pred_check
      _
    $region27: #{tpu_custom_call.1} parent=1 // pred_check_branch
      %137 = sbr.rel (0) target = $region29
    $region28: #{tpu_custom_call.1} parent=1 // pred_region
      %s139 = ssub.s32 128, 128
      %140 = vsyncadd [#allocation5], %s139
      %s142 = sshll.u32 [#allocation8], 4
      %s143 = int_to_ptr.vmem [resolvable:$true] %s142
      %145 = dma.vmem_to_hbm [thread:$0]  %s143, 128, %s2, [#allocation5]
    $region29: #{tpu_custom_call.1} parent=1 // pred_fallthru
      _
    // Predicated region
    $region30: #{tpu_custom_call.1} parent=1 // pred_check
      _
    $region31: #{tpu_custom_call.1} parent=1 // pred_check_branch
      %147 = sbr.rel (0) target = $region33
    $region32: #{tpu_custom_call.1} parent=1 // pred_region
      %148 = dma.done [#allocation5], 128
    $region33: #{tpu_custom_call.1} parent=1 // pred_fallthru
      _
    %149 = vsyncpa [#allocation4], 1
    %150 = vsyncpa [#allocation7], 1
    %151 = vsyncpa [#allocation5], 1

</llo_original>
